<compile_context>
chip_gen: v7x
topology: tpu7x:2x2x1
jax: 0.10.0
libtpu: 0.0.40
codegen_flags: <defaults>
</compile_context>

<pallas_src>
import functools

import jax
import jax.numpy as jnp
from jax.experimental import pallas as pl
from jax.experimental.pallas import tpu as pltpu

LANE = 128  # TPU vreg lane width


def _round_up(n, m):
    return (n + m - 1) // m * m


def gmlp_kernel(x_ref, w1_ref, b1_ref, w2_ref, b2_ref, o_ref, *, hp):
    # x_ref : (tm, C_in)     input dtype (e.g. f32) -- cast on-tile below
    # w1_ref: (C_in, 2*Hp)   bf16 fused fc1 (x-half in [0:Hp), z-half in [Hp:2Hp))
    # b1_ref: (1, 2*Hp)      f32
    # w2_ref: (Hp, C_out)    bf16 (C_out unpadded; block last dim == full array dim)
    # b2_ref: (1, C_out)     f32
    # o_ref : (tm, C_out)    input dtype
    x = x_ref[...].astype(w1_ref.dtype)  # VPU cast, hidden under DMA/MXU

    # Single fused fc1 matmul (256-wide RHS fills the v6e/v7x MXU), f32 accumulate.
    h = jnp.dot(x, w1_ref[...], preferred_element_type=jnp.float32) + b1_ref[...]

    # Hp is a multiple of 128 -> lane-tile-aligned split, no cross-lane relayout.
    hx = h[:, :hp]
    hz = h[:, hp:]

    # tanh-form GELU lowers to the EUP (its own VLIW slot) instead of an erf
    # VALU polynomial; gate stays in f32.
    gated = hx * jax.nn.gelu(hz, approximate=True)

    # fc2 (MXU) + f32 bias; store in the output dtype (unpadded C_out columns).
    y = jnp.dot(gated.astype(w2_ref.dtype), w2_ref[...],
                preferred_element_type=jnp.float32) + b2_ref[...]
    o_ref[...] = y.astype(o_ref.dtype)


def prepare_gmlp_params(w1, b1, w2, b2, compute_dtype=jnp.bfloat16):
    """One-time (load-time) parameter preparation.

    PyTorch-shaped inputs: w1 (2*hidden, C_in), b1 (2*hidden,), w2 (C_out, hidden),
    b2 (C_out,). Produces a single fused, transposed, zero-padded fc1 operand
    (x-half at columns [0:Hp), z-half at [Hp:2Hp)) plus fc2 operands, so the
    per-call path does no transposes / re-layouts / extra weight DMA streams.
    """
    two_hidden, c_in = w1.shape
    hidden = two_hidden // 2
    c_out = w2.shape[0]
    hp = _round_up(hidden, LANE)  # padded hidden -> lane-dense intermediates

    w1f = jnp.zeros((c_in, 2 * hp), compute_dtype)
    w1f = w1f.at[:, :hidden].set(w1[:hidden].T.astype(compute_dtype))
    w1f = w1f.at[:, hp:hp + hidden].set(w1[hidden:].T.astype(compute_dtype))

    b1f = jnp.zeros((1, 2 * hp), jnp.float32)
    b1f = b1f.at[:, :hidden].set(b1[:hidden].astype(jnp.float32)[None, :])
    b1f = b1f.at[:, hp:hp + hidden].set(b1[hidden:].astype(jnp.float32)[None, :])

    w2t = w2.T.astype(compute_dtype)                  # (hidden, C_out)
    if hp != hidden:                                  # padded rows contribute 0
        w2t = jnp.pad(w2t, ((0, hp - hidden), (0, 0)))
    b2r = b2.astype(jnp.float32)[None, :]             # (1, C_out)

    return dict(w1f=w1f, b1f=b1f, w2t=w2t, b2r=b2r,
                c_in=c_in, hidden=hidden, hp=hp, c_out=c_out)


def gmlp_forward(x, params, *, tm=256):
    """x: (B, H, W, C_in) channels-last. `params` from prepare_gmlp_params.
    Returns (B, H, W, C_out). Dropout(p=0) is identity and therefore omitted."""
    B, H, W, c_in = x.shape
    assert c_in == params["c_in"]
    c_out = params["c_out"]
    hp = params["hp"]
    w1f, b1f = params["w1f"], params["b1f"]
    w2t, b2r = params["w2t"], params["b2r"]

    M = B * H * W
    # Prefer a tile that divides M (no wrapper pad pass); pad only as a fallback.
    if M % tm == 0:
        m_pad = M
    else:
        m_pad = _round_up(M, tm)

    x2 = x.reshape(M, c_in)          # original dtype: cast happens in-kernel
    if m_pad != M:
        x2 = jnp.pad(x2, ((0, m_pad - M), (0, 0)))

    in_itemsize = jnp.dtype(x.dtype).itemsize
    w_itemsize = jnp.dtype(w1f.dtype).itemsize
    # Double-buffered per-step footprint + f32 intermediates, +16 MiB headroom,
    # clamped to 48 MiB (safe on v7x's 64 MiB physical VMEM).
    per_step = (tm * c_in * in_itemsize
                + c_in * 2 * hp * w_itemsize + 2 * hp * 4
                + hp * c_out * w_itemsize + c_out * 4
                + tm * c_out * in_itemsize)
    working = 3 * tm * 2 * hp * 4
    vmem_limit = min(max(2 * per_step + working + (16 << 20), 16 << 20), 48 << 20)

    out = pl.pallas_call(
        functools.partial(gmlp_kernel, hp=hp),
        out_shape=jax.ShapeDtypeStruct((m_pad, c_out), x.dtype),
        grid_spec=pltpu.PrefetchScalarGridSpec(
            num_scalar_prefetch=0,
            grid=(m_pad // tm,),
            in_specs=[
                pl.BlockSpec((tm, c_in), lambda i: (i, 0)),
                pl.BlockSpec((c_in, 2 * hp), lambda i: (0, 0)),
                pl.BlockSpec((1, 2 * hp), lambda i: (0, 0)),
                pl.BlockSpec((hp, c_out), lambda i: (0, 0)),
                pl.BlockSpec((1, c_out), lambda i: (0, 0)),
            ],
            out_specs=pl.BlockSpec((tm, c_out), lambda i: (i, 0)),
        ),
        compiler_params=pltpu.CompilerParams(
            dimension_semantics=("parallel",),
            vmem_limit_bytes=int(vmem_limit),
        ),
    )(x2, w1f, b1f, w2t, b2r)

    if m_pad != M:
        out = out[:M]
    return out.reshape(B, H, W, c_out)


def gmlp_reference(x, w1, b1, w2, b2):
    # Exact torch.nn semantics (nn.Linear + erf GELU) in f32.
    h = jnp.einsum("bhwc,oc->bhwo", x, w1) + b1
    hidden = w2.shape[1]
    x_p, z = h[..., :hidden], h[..., hidden:]
    g = x_p * jax.nn.gelu(z, approximate=False)
    return jnp.einsum("bhwc,oc->bhwo", g, w2) + b2


if __name__ == "__main__":
    # Small shapes consistent with the module: in_features=32, hidden_features=64,
    # out_features=in_features (default), spatial 16x16, batch 2.
    # M = 2*16*16 = 512 -> grid of 2 even tiles of tm=256 (feeds both v7x TCs),
    # and tm divides M so no wrapper pad pass.
    B, H, W = 2, 16, 16
    in_features = 32
    hidden_features = 64
    out_features = in_features

    key = jax.random.PRNGKey(0)
    kx, k1, kb1, k2, kb2 = jax.random.split(key, 5)

    x = jax.random.normal(kx, (B, H, W, in_features), dtype=jnp.float32)

    # Deterministic parameter init (PyTorch-shaped: (out, in) weights).
    w1 = 0.05 * jax.random.normal(k1, (2 * hidden_features, in_features), jnp.float32)
    b1 = 0.05 * jax.random.normal(kb1, (2 * hidden_features,), jnp.float32)
    w2 = 0.05 * jax.random.normal(k2, (out_features, hidden_features), jnp.float32)
    b2 = 0.05 * jax.random.normal(kb2, (out_features,), jnp.float32)

    # One-time parameter prep (transpose/fuse/pad/cast) outside the per-call path.
    params = prepare_gmlp_params(w1, b1, w2, b2)

    y = gmlp_forward(x, params, tm=256)
    y = jax.block_until_ready(y)

    y_ref = gmlp_reference(x, w1, b1, w2, b2)
    assert y.shape == (B, H, W, out_features)
    # Tolerance covers bf16 rounding of the MXU operands plus the tanh-vs-erf GELU
    # difference (both ~1e-3 level at these magnitudes); reference is exact f32/erf.
    err = float(jnp.max(jnp.abs(y - y_ref)))
    assert jnp.allclose(y, y_ref, atol=5e-3, rtol=5e-2), f"max abs err {err}"

    print("KERNEL_OK")
</pallas_src>

<mosaic_0001>
module attributes {stable_mosaic.version = 11 : i64} {
  func.func @gmlp_kernel(%arg0: i32, %arg1: memref<256x32xf32, #tpu.memory_space<vmem>>, %arg2: memref<32x256xbf16, #tpu.memory_space<vmem>>, %arg3: memref<1x256xf32, #tpu.memory_space<vmem>>, %arg4: memref<128x32xbf16, #tpu.memory_space<vmem>>, %arg5: memref<1x32xf32, #tpu.memory_space<vmem>>, %arg6: memref<256x32xf32, #tpu.memory_space<vmem>>) attributes {dimension_semantics = [#tpu.dimension_semantics<parallel>], iteration_bounds = array<i64: 2>, scalar_prefetch = 0 : i64, scratch_operands = 0 : i64, tpu.core_type = #tpu.core_type<tc>, window_params = [{transform_indices = @transform_0, window_bounds = array<i64: 256, 32>}, {pipeline_mode = #tpu.pipeline_mode<synchronous>, transform_indices = @transform_1, window_bounds = array<i64: 32, 256>}, {pipeline_mode = #tpu.pipeline_mode<synchronous>, transform_indices = @transform_2, window_bounds = array<i64: 1, 256>}, {pipeline_mode = #tpu.pipeline_mode<synchronous>, transform_indices = @transform_3, window_bounds = array<i64: 128, 32>}, {pipeline_mode = #tpu.pipeline_mode<synchronous>, transform_indices = @transform_4, window_bounds = array<i64: 1, 32>}, {transform_indices = @transform_5, window_bounds = array<i64: 256, 32>}]} {
    %c0 = arith.constant 0 : index
    %c0_0 = arith.constant 0 : index
    %0 = vector.load %arg1[%c0, %c0_0] : memref<256x32xf32, #tpu.memory_space<vmem>>, vector<256x32xf32>
    %1 = arith.truncf %0 : vector<256x32xf32> to vector<256x32xbf16>
    %c0_1 = arith.constant 0 : index
    %c0_2 = arith.constant 0 : index
    %2 = vector.load %arg2[%c0_1, %c0_2] : memref<32x256xbf16, #tpu.memory_space<vmem>>, vector<32x256xbf16>
    %cst = arith.constant dense<0.000000e+00> : vector<256x256xf32>
    %3 = tpu.matmul %1, %2, %cst {dimension_numbers = #tpu.dot_dimension_numbers<[1], [0], [0], [1], [0, 0, 1, 1], [], []>} : vector<256x32xbf16>, vector<32x256xbf16>, vector<256x256xf32> -> vector<256x256xf32>
    %c0_3 = arith.constant 0 : index
    %c0_4 = arith.constant 0 : index
    %4 = vector.load %arg3[%c0_3, %c0_4] : memref<1x256xf32, #tpu.memory_space<vmem>>, vector<1x256xf32>
    %5 = vector.broadcast %4 : vector<1x256xf32> to vector<256x256xf32>
    %6 = arith.addf %3, %5 : vector<256x256xf32>
    %7 = vector.extract_strided_slice %6 {offsets = [0, 0], sizes = [256, 128], strides = [1, 1]} : vector<256x256xf32> to vector<256x128xf32>
    %8 = vector.extract_strided_slice %6 {offsets = [0, 128], sizes = [256, 128], strides = [1, 1]} : vector<256x256xf32> to vector<256x128xf32>
    %9 = arith.mulf %8, %8 : vector<256x128xf32>
    %10 = arith.mulf %8, %9 : vector<256x128xf32>
    %cst_5 = arith.constant 4.471500e-02 : f32
    %11 = vector.broadcast %cst_5 : f32 to vector<256x128xf32>
    %12 = arith.mulf %11, %10 : vector<256x128xf32>
    %13 = arith.addf %8, %12 : vector<256x128xf32>
    %cst_6 = arith.constant 0.797884583 : f32
    %14 = vector.broadcast %cst_6 : f32 to vector<256x128xf32>
    %15 = arith.mulf %14, %13 : vector<256x128xf32>
    %16 = math.tanh %15 : vector<256x128xf32>
    %cst_7 = arith.constant 1.000000e+00 : f32
    %17 = vector.broadcast %cst_7 : f32 to vector<256x128xf32>
    %18 = arith.addf %17, %16 : vector<256x128xf32>
    %cst_8 = arith.constant 5.000000e-01 : f32
    %19 = vector.broadcast %cst_8 : f32 to vector<256x128xf32>
    %20 = arith.mulf %19, %18 : vector<256x128xf32>
    %21 = arith.mulf %8, %20 : vector<256x128xf32>
    %22 = arith.mulf %7, %21 : vector<256x128xf32>
    %23 = arith.truncf %22 : vector<256x128xf32> to vector<256x128xbf16>
    %c0_9 = arith.constant 0 : index
    %c0_10 = arith.constant 0 : index
    %24 = vector.load %arg4[%c0_9, %c0_10] : memref<128x32xbf16, #tpu.memory_space<vmem>>, vector<128x32xbf16>
    %cst_11 = arith.constant dense<0.000000e+00> : vector<256x32xf32>
    %25 = tpu.matmul %23, %24, %cst_11 {dimension_numbers = #tpu.dot_dimension_numbers<[1], [0], [0], [1], [0, 0, 1, 1], [], []>} : vector<256x128xbf16>, vector<128x32xbf16>, vector<256x32xf32> -> vector<256x32xf32>
    %c0_12 = arith.constant 0 : index
    %c0_13 = arith.constant 0 : index
    %26 = vector.load %arg5[%c0_12, %c0_13] : memref<1x32xf32, #tpu.memory_space<vmem>>, vector<1x32xf32>
    %27 = vector.broadcast %26 : vector<1x32xf32> to vector<256x32xf32>
    %28 = arith.addf %25, %27 : vector<256x32xf32>
    %c0_14 = arith.constant 0 : index
    %c0_15 = arith.constant 0 : index
    %29 = vector.load %arg6[%c0_14, %c0_15] : memref<256x32xf32, #tpu.memory_space<vmem>>, vector<256x32xf32>
    tpu.vector_store %arg6[%c0_14, %c0_15], %28 {strides = array<i32>} : memref<256x32xf32, #tpu.memory_space<vmem>>, vector<256x32xf32>,
    return
  }
  func.func @transform_0(%arg0: i32) -> (i32, i32) {
    %c0_i32 = arith.constant 0 : i32
    %c0_i32_0 = arith.constant 0 : i32
    return %arg0, %c0_i32 : i32, i32
  }
  func.func @transform_1(%arg0: i32) -> (i32, i32) {
    %c0_i32 = arith.constant 0 : i32
    %c0_i32_0 = arith.constant 0 : i32
    %c0_i32_1 = arith.constant 0 : i32
    return %c0_i32, %c0_i32_0 : i32, i32
  }
  func.func @transform_2(%arg0: i32) -> (i32, i32) {
    %c0_i32 = arith.constant 0 : i32
    %c0_i32_0 = arith.constant 0 : i32
    %c0_i32_1 = arith.constant 0 : i32
    return %c0_i32, %c0_i32_0 : i32, i32
  }
  func.func @transform_3(%arg0: i32) -> (i32, i32) {
    %c0_i32 = arith.constant 0 : i32
    %c0_i32_0 = arith.constant 0 : i32
    %c0_i32_1 = arith.constant 0 : i32
    return %c0_i32, %c0_i32_0 : i32, i32
  }
  func.func @transform_4(%arg0: i32) -> (i32, i32) {
    %c0_i32 = arith.constant 0 : i32
    %c0_i32_0 = arith.constant 0 : i32
    %c0_i32_1 = arith.constant 0 : i32
    return %c0_i32, %c0_i32_0 : i32, i32
  }
  func.func @transform_5(%arg0: i32) -> (i32, i32) {
    %c0_i32 = arith.constant 0 : i32
    %c0_i32_0 = arith.constant 0 : i32
    return %arg0, %c0_i32 : i32, i32
  }
}

</mosaic_0001>

<llo_original>
// kernel: tpu_custom_call.1
$region0: #{tpu_custom_call.1}
  #allocation0 [shape = 'u32[]', space=smem, size = 0x4, offset = 0x4, fixed_abs, tag = 'smem constant byte address 0x4 - core index']
  #allocation1 [shape = 'u32[144,128]{1,0:T(1,128)}', space=vmem, size = 0x12000, scoped, tag = 'internal scratch']
  %s0 = inlined_call_operand.vmem [shape: f32[512,32], index: 0, kind: input, shape index: {}]
  %s1 = inlined_call_operand.vmem [shape: bf16[32,256], index: 1, kind: input, shape index: {}]
  %s2 = inlined_call_operand.vmem [shape: f32[1,256], index: 2, kind: input, shape index: {}]
  %s3 = inlined_call_operand.vmem [shape: bf16[128,32], index: 3, kind: input, shape index: {}]
  %s4 = inlined_call_operand.vmem [shape: f32[1,32], index: 4, kind: input, shape index: {}]
  %s5 = inlined_call_operand.vmem [shape: f32[512,32], index: 5, kind: output, shape index: {}]
  %s6 = sld [smem:[#allocation0]]
  $region53: #{tpu_custom_call.1} parent=0
    _
  %s8 = ssub.s32 1, %s6
  %s9 = scalar_select 0, %s8, %s6
  loop: start=0, step=1, limit=4
  $region2: #{tpu_custom_call.1} parent=0 // loop_pre_header
    _
  $region3: #{tpu_custom_call.1} parent=0 // loop_header
    %s11 = sphi 0, %s15
    %p12 = scmp.ge.s32.totalorder %s11, 4
    %s21 = sphi 0, %s23
    %s24 = sphi 0, %s21
    %s25 = sphi 0, %s24
    %s41 = sphi 0, %s25
    %s45 = sphi 0, %s45
    %s47 = sphi 0, %s45
    %s48 = sphi 0, %s47
    %s62 = sphi 0, %s48
    %s66 = sphi 0, %s66
    %s68 = sphi 0, %s66
    %s69 = sphi 0, %s68
    %s83 = sphi 0, %s69
    %s87 = sphi 0, %s87
    %s89 = sphi 0, %s87
    %s90 = sphi 0, %s89
    %s104 = sphi 0, %s90
    %s108 = sphi 0, %s108
    %s110 = sphi 0, %s108
    %s111 = sphi 0, %s110
    %s125 = sphi 0, %s111
    %s131 = sphi 0, %s133
    %s134 = sphi 0, %s131
    %s135 = sphi 0, %s134
    %s151 = sphi 0, %s135
  $region4: #{tpu_custom_call.1} parent=0 // loop_header_branch
    %14 = sbr.rel (%p12) target = $region8
  $region5: #{tpu_custom_call.1} parent=0 // loop_body
    %s16 = ssub.s32 %s11, 1
    %s17 = ssub.s32 %s11, 2
    %s18 = sadd.s32 %s11, 1
    %s19 = ssub.s32 %s11, %s18
    %p20 = scmp.eq.s32.totalorder %s19, 0
    %s22 = sadd.s32 %s21, 1
    %s23 = scalar_select %p20, %s21, %s22
    %p26 = pneg %p20
    %p27 = scmp.eq.s32.totalorder %s11, 1
    %p28 = por %p26, %p27
    %p29 = scmp.ne.s32.totalorder %s21, %s24
    %p30 = scmp.eq.s32.totalorder %s11, 0
    %p31 = por %p29, %p30
    %p32 = scmp.ne.s32.totalorder %s21, %s24
    %p33 = scmp.eq.s32.totalorder %s16, 1
    %p34 = por %p32, %p33
    %p35 = scmp.ne.s32.totalorder %s24, %s25
    %p36 = scmp.eq.s32.totalorder %s16, 0
    %p37 = por %p35, %p36
    %p38 = scmp.ne.s32.totalorder %s24, %s25
    %p39 = scmp.eq.s32.totalorder %s17, 1
    %p40 = por %p38, %p39
    %p42 = scmp.ne.s32.totalorder %s25, %s41
    %p43 = scmp.eq.s32.totalorder %s17, 0
    %p44 = por %p42, %p43
    %s46 = sadd.s32 %s45, 1
    %p49 = scmp.eq.s32.totalorder %s11, 1
    %p50 = scmp.ne.s32.totalorder %s45, %s47
    %p51 = scmp.eq.s32.totalorder %s11, 0
    %p52 = por %p50, %p51
    %p53 = scmp.ne.s32.totalorder %s45, %s47
    %p54 = scmp.eq.s32.totalorder %s16, 1
    %p55 = por %p53, %p54
    %p56 = scmp.ne.s32.totalorder %s47, %s48
    %p57 = scmp.eq.s32.totalorder %s16, 0
    %p58 = por %p56, %p57
    %p59 = scmp.ne.s32.totalorder %s47, %s48
    %p60 = scmp.eq.s32.totalorder %s17, 1
    %p61 = por %p59, %p60
    %p63 = scmp.ne.s32.totalorder %s48, %s62
    %p64 = scmp.eq.s32.totalorder %s17, 0
    %p65 = por %p63, %p64
    %s67 = sadd.s32 %s66, 1
    %p70 = scmp.eq.s32.totalorder %s11, 1
    %p71 = scmp.ne.s32.totalorder %s66, %s68
    %p72 = scmp.eq.s32.totalorder %s11, 0
    %p73 = por %p71, %p72
    %p74 = scmp.ne.s32.totalorder %s66, %s68
    %p75 = scmp.eq.s32.totalorder %s16, 1
    %p76 = por %p74, %p75
    %p77 = scmp.ne.s32.totalorder %s68, %s69
    %p78 = scmp.eq.s32.totalorder %s16, 0
    %p79 = por %p77, %p78
    %p80 = scmp.ne.s32.totalorder %s68, %s69
    %p81 = scmp.eq.s32.totalorder %s17, 1
    %p82 = por %p80, %p81
    %p84 = scmp.ne.s32.totalorder %s69, %s83
    %p85 = scmp.eq.s32.totalorder %s17, 0
    %p86 = por %p84, %p85
    %s88 = sadd.s32 %s87, 1
    %p91 = scmp.eq.s32.totalorder %s11, 1
    %p92 = scmp.ne.s32.totalorder %s87, %s89
    %p93 = scmp.eq.s32.totalorder %s11, 0
    %p94 = por %p92, %p93
    %p95 = scmp.ne.s32.totalorder %s87, %s89
    %p96 = scmp.eq.s32.totalorder %s16, 1
    %p97 = por %p95, %p96
    %p98 = scmp.ne.s32.totalorder %s89, %s90
    %p99 = scmp.eq.s32.totalorder %s16, 0
    %p100 = por %p98, %p99
    %p101 = scmp.ne.s32.totalorder %s89, %s90
    %p102 = scmp.eq.s32.totalorder %s17, 1
    %p103 = por %p101, %p102
    %p105 = scmp.ne.s32.totalorder %s90, %s104
    %p106 = scmp.eq.s32.totalorder %s17, 0
    %p107 = por %p105, %p106
    %s109 = sadd.s32 %s108, 1
    %p112 = scmp.eq.s32.totalorder %s11, 1
    %p113 = scmp.ne.s32.totalorder %s108, %s110
    %p114 = scmp.eq.s32.totalorder %s11, 0
    %p115 = por %p113, %p114
    %p116 = scmp.ne.s32.totalorder %s108, %s110
    %p117 = scmp.eq.s32.totalorder %s16, 1
    %p118 = por %p116, %p117
    %p119 = scmp.ne.s32.totalorder %s110, %s111
    %p120 = scmp.eq.s32.totalorder %s16, 0
    %p121 = por %p119, %p120
    %p122 = scmp.ne.s32.totalorder %s110, %s111
    %p123 = scmp.eq.s32.totalorder %s17, 1
    %p124 = por %p122, %p123
    %p126 = scmp.ne.s32.totalorder %s111, %s125
    %p127 = scmp.eq.s32.totalorder %s17, 0
    %p128 = por %p126, %p127
    %s129 = ssub.s32 %s11, %s18
    %p130 = scmp.eq.s32.totalorder %s129, 0
    %s132 = sadd.s32 %s131, 1
    %s133 = scalar_select %p130, %s131, %s132
    %p136 = pneg %p130
    %p137 = scmp.eq.s32.totalorder %s11, 1
    %p138 = por %p136, %p137
    %p139 = scmp.ne.s32.totalorder %s131, %s134
    %p140 = scmp.eq.s32.totalorder %s11, 0
    %p141 = por %p139, %p140
    %p142 = scmp.ne.s32.totalorder %s131, %s134
    %p143 = scmp.eq.s32.totalorder %s16, 1
    %p144 = por %p142, %p143
    %p145 = scmp.ne.s32.totalorder %s134, %s135
    %p146 = scmp.eq.s32.totalorder %s16, 0
    %p147 = por %p145, %p146
    %p148 = scmp.ne.s32.totalorder %s134, %s135
    %p149 = scmp.eq.s32.totalorder %s17, 1
    %p150 = por %p148, %p149
    %p152 = scmp.ne.s32.totalorder %s135, %s151
    %p153 = scmp.eq.s32.totalorder %s17, 0
    %p154 = por %p152, %p153
    %p155 = scmp.le.s32.totalorder 1, %s11
    %p156 = scmp.lt.s32.totalorder %s11, 3
    %p157 = pnand %p155, %p156
    %p158 = pneg %p157
    // Predicated region
    $region9: #{tpu_custom_call.1} parent=5 // pred_check
      _
    $region10: #{tpu_custom_call.1} parent=5 // pred_check_branch
      %160 = sbr.rel (%p157) target = $region12
    $region11: #{tpu_custom_call.1} parent=5 // pred_region
      %s161 = ssub.s32 %s11, 1
      // Predicated region
      $region13: #{tpu_custom_call.1} parent=11 // pred_check
        %p162 = pneg %p58
      $region14: #{tpu_custom_call.1} parent=11 // pred_check_branch
        %164 = sbr.rel (%p162) target = $region16
      $region15: #{tpu_custom_call.1} parent=11 // pred_region
        _
      $region16: #{tpu_custom_call.1} parent=11 // pred_fallthru
        _
      // Predicated region
      $region17: #{tpu_custom_call.1} parent=11 // pred_check
        %p165 = pneg %p79
      $region18: #{tpu_custom_call.1} parent=11 // pred_check_branch
        %167 = sbr.rel (%p165) target = $region20
      $region19: #{tpu_custom_call.1} parent=11 // pred_region
        _
      $region20: #{tpu_custom_call.1} parent=11 // pred_fallthru
        _
      // Predicated region
      $region21: #{tpu_custom_call.1} parent=11 // pred_check
        %p168 = pneg %p100
      $region22: #{tpu_custom_call.1} parent=11 // pred_check_branch
        %170 = sbr.rel (%p168) target = $region24
      $region23: #{tpu_custom_call.1} parent=11 // pred_region
        _
      $region24: #{tpu_custom_call.1} parent=11 // pred_fallthru
        _
      // Predicated region
      $region25: #{tpu_custom_call.1} parent=11 // pred_check
        %p171 = pneg %p121
      $region26: #{tpu_custom_call.1} parent=11 // pred_check_branch
        %173 = sbr.rel (%p171) target = $region28
      $region27: #{tpu_custom_call.1} parent=11 // pred_region
        _
      $region28: #{tpu_custom_call.1} parent=11 // pred_fallthru
        _
    $region12: #{tpu_custom_call.1} parent=5 // pred_fallthru
      _
    %p174 = scmp.lt.s32.totalorder %s11, 2
    // Predicated region
    $region29: #{tpu_custom_call.1} parent=5 // pred_check
      %p175 = pneg %p174
    $region30: #{tpu_custom_call.1} parent=5 // pred_check_branch
      %177 = sbr.rel (%p175) target = $region32
    $region31: #{tpu_custom_call.1} parent=5 // pred_region
      // Predicated region
      $region33: #{tpu_custom_call.1} parent=31 // pred_check
        %p178 = pneg %p31
      $region34: #{tpu_custom_call.1} parent=31 // pred_check_branch
        %180 = sbr.rel (%p178) target = $region36
      $region35: #{tpu_custom_call.1} parent=31 // pred_region
        %s181 = smul.u32 32, %s11
        %p182 = scmp.lt.s32.totalorder %s181, 63
        %s183 = scalar_select %p182, %s181, 63
        %s184 = smul.addr %s183, 8
        %s185 = scalar_lea.vmem %s0, %s184
        %s186 = smul.u32 32, %s11
      $region36: #{tpu_custom_call.1} parent=31 // pred_fallthru
        _
    $region32: #{tpu_custom_call.1} parent=5 // pred_fallthru
      _
    %p187 = scmp.le.s32.totalorder 1, %s11
    %p188 = scmp.lt.s32.totalorder %s11, 3
    %p189 = pnand %p187, %p188
    %p190 = pneg %p189
    // Predicated region
    $region37: #{tpu_custom_call.1} parent=5 // pred_check
      _
    $region38: #{tpu_custom_call.1} parent=5 // pred_check_branch
      %192 = sbr.rel (%p189) target = $region40
    $region39: #{tpu_custom_call.1} parent=5 // pred_region
      %s193 = ssub.s32 %s11, 1
      %s194 = smul.u32 32, %s16
      %p195 = scmp.lt.s32.totalorder %s194, 63
      %s196 = scalar_select %p195, %s194, 63
      %s197 = smul.addr %s196, 8
      %s198 = scalar_lea.vmem %s0, %s197
      %p199 = pneg %p37
      %p200 = pneg %p34
      %p201 = pneg %p58
      %p202 = pneg %p55
      %p203 = pneg %p79
      %p204 = pneg %p76
      %p205 = pneg %p100
      %p206 = pneg %p97
      %p207 = pneg %p121
      %p208 = pneg %p118
      %p209 = pneg %p147
      %p210 = pneg %p144
      %s211 = smul.u32 32, %s16
      %p212 = scmp.lt.s32.totalorder %s211, 63
      %s213 = scalar_select %p212, %s211, 63
      %s214 = smul.addr %s213, 8
      %s215 = scalar_lea.vmem %s5, %s214
      %s216 = smul.u32 32, %s16
      %p217 = scmp.lt.s32.totalorder %s216, 63
      %s218 = scalar_select %p217, %s216, 63
      %s219 = smul.addr %s218, 8
      %s220 = scalar_lea.vmem %s0, %s219
      %s221 = smul.u32 32, %s16
      %s222 = smul.u32 32, %s16
      %p223 = scmp.lt.s32.totalorder %s222, 63
      %s224 = scalar_select %p223, %s222, 63
      %s225 = smul.addr %s224, 8
      %s226 = scalar_lea.vmem %s5, %s225
      %s227 = smul.u32 32, %s16
      %v229 = vld [vmem:[%s220] sm:$0xff]
      %v230 = vld [vmem:[%s220 + $0x8] sm:$0xff]
      %v231 = vld [vmem:[%s220 + $0x10] sm:$0xff]
      %v232 = vld [vmem:[%s220 + $0x18] sm:$0xff]
      %v233 = vld [vmem:[%s220 + $0x20] sm:$0xff]
      %v234 = vld [vmem:[%s220 + $0x28] sm:$0xff]
      %v235 = vld [vmem:[%s220 + $0x30] sm:$0xff]
      %v236 = vld [vmem:[%s220 + $0x38] sm:$0xff]
      %v237 = vld [vmem:[%s220 + $0x40] sm:$0xff]
      %v238 = vld [vmem:[%s220 + $0x48] sm:$0xff]
      %v239 = vld [vmem:[%s220 + $0x50] sm:$0xff]
      %v240 = vld [vmem:[%s220 + $0x58] sm:$0xff]
      %v241 = vld [vmem:[%s220 + $0x60] sm:$0xff]
      %v242 = vld [vmem:[%s220 + $0x68] sm:$0xff]
      %v243 = vld [vmem:[%s220 + $0x70] sm:$0xff]
      %v244 = vld [vmem:[%s220 + $0x78] sm:$0xff]
      %v245 = vld [vmem:[%s220 + $0x80] sm:$0xff]
      %v246 = vld [vmem:[%s220 + $0x88] sm:$0xff]
      %v247 = vld [vmem:[%s220 + $0x90] sm:$0xff]
      %v248 = vld [vmem:[%s220 + $0x98] sm:$0xff]
      %v249 = vld [vmem:[%s220 + $0xa0] sm:$0xff]
      %v250 = vld [vmem:[%s220 + $0xa8] sm:$0xff]
      %v251 = vld [vmem:[%s220 + $0xb0] sm:$0xff]
      %v252 = vld [vmem:[%s220 + $0xb8] sm:$0xff]
      %v253 = vld [vmem:[%s220 + $0xc0] sm:$0xff]
      %v254 = vld [vmem:[%s220 + $0xc8] sm:$0xff]
      %v255 = vld [vmem:[%s220 + $0xd0] sm:$0xff]
      %v256 = vld [vmem:[%s220 + $0xd8] sm:$0xff]
      %v257 = vld [vmem:[%s220 + $0xe0] sm:$0xff]
      %v258 = vld [vmem:[%s220 + $0xe8] sm:$0xff]
      %v259 = vld [vmem:[%s220 + $0xf0] sm:$0xff]
      %v260 = vld [vmem:[%s220 + $0xf8] sm:$0xff]
      %v261 = vpack.c.bf16 %v230, %v229
      %v262 = vpack.c.bf16 %v232, %v231
      %v263 = vpack.c.bf16 %v234, %v233
      %v264 = vpack.c.bf16 %v236, %v235
      %v265 = vpack.c.bf16 %v238, %v237
      %v266 = vpack.c.bf16 %v240, %v239
      %v267 = vpack.c.bf16 %v242, %v241
      %v268 = vpack.c.bf16 %v244, %v243
      %v269 = vpack.c.bf16 %v246, %v245
      %v270 = vpack.c.bf16 %v248, %v247
      %v271 = vpack.c.bf16 %v250, %v249
      %v272 = vpack.c.bf16 %v252, %v251
      %v273 = vpack.c.bf16 %v254, %v253
      %v274 = vpack.c.bf16 %v256, %v255
      %v275 = vpack.c.bf16 %v258, %v257
      %v276 = vpack.c.bf16 %v260, %v259
      %v277 = vld [vmem:[%s1] sm:$0xff]
      %v278 = vld [vmem:[%s1 + $0x8] sm:$0xff]
      %v279 = vld [vmem:[%s1 + $0x10] sm:$0xff]
      %v280 = vld [vmem:[%s1 + $0x18] sm:$0xff]
      %v281 = vld [vmem:[%s2] sm:$0x3]
      %v283 = vlaneseq
      %v284 = vshrl.u32 %v283, 7
      %v285 = vsub.s32 0, %v284
      %v286 = vrot.slane %v281, %v285
      %v287 = vlaneseq
      %v288 = vshrl.u32 %v287, 7
      %v289 = vsub.s32 1, %v288
      %v290 = vrot.slane %v281, %v289
      %v297 = vunpack.c.l.b16 %v277
      %v298 = vunpack.c.h.b16 %v277
      %v299 = vunpack.c.l.b16 %v278
      %v300 = vunpack.c.h.b16 %v278
      %v301 = vunpack.c.l.b16 %v279
      %v302 = vunpack.c.h.b16 %v279
      %v303 = vunpack.c.l.b16 %v280
      %v304 = vunpack.c.h.b16 %v280
      %v305 = vpack.c.b16 %v299, %v297
      %v306 = vpack.c.b16 %v300, %v298
      %v307 = vpack.c.b16 %v303, %v301
      %v308 = vpack.c.b16 %v304, %v302
      %vm313 = vcmask 261120
      %v315 = vsel %vm313, %v261, 0
      %v318 = vsel %vm313, %v262, 0
      %v321 = vsel %vm313, %v263, 0
      %v324 = vsel %vm313, %v264, 0
      %v327 = vsel %vm313, %v265, 0
      %v330 = vsel %vm313, %v266, 0
      %v333 = vsel %vm313, %v267, 0
      %v336 = vsel %vm313, %v268, 0
      %v339 = vsel %vm313, %v269, 0
      %v342 = vsel %vm313, %v270, 0
      %v345 = vsel %vm313, %v271, 0
      %v348 = vsel %vm313, %v272, 0
      %v351 = vsel %vm313, %v273, 0
      %v354 = vsel %vm313, %v274, 0
      %v357 = vsel %vm313, %v275, 0
      %v360 = vsel %vm313, %v276, 0
      %362 = vmatprep.subr.bf16.mxu0 %v306
      %363 = vmatpush1.bf16.msra.mxu0 %v305
      %364 = vmatprep.subr.bf16.mxu0 %v308
      %365 = vmatpush1.bf16.msra.mxu0 %v307
      %366 = vmatprep.subr.bf16.mxu0 0
      %367 = vmatpush1.bf16.msra.mxu0 0
      %368 = vmatprep.subr.bf16.mxu0 0
      %369 = vmatpush1.bf16.msra.mxu0 0
      %370 = vmatprep.subr.bf16.mxu0 0
      %371 = vmatpush1.bf16.msra.mxu0 0
      %372 = vmatprep.subr.bf16.mxu0 0
      %373 = vmatpush1.bf16.msra.mxu0 0
      %374 = vmatprep.subr.bf16.mxu0 0
      %375 = vmatpush1.bf16.msra.mxu0 0
      %376 = vmatprep.subr.bf16.mxu0 0
      %377 = vmatpush1.bf16.msra.mxu0 0
      %378 = vmatprep.subr.bf16.mxu0 0
      %379 = vmatpush1.bf16.msra.mxu0 0
      %380 = vmatprep.subr.bf16.mxu0 0
      %381 = vmatpush1.bf16.msra.mxu0 0
      %382 = vmatprep.subr.bf16.mxu0 0
      %383 = vmatpush1.bf16.msra.mxu0 0
      %384 = vmatprep.subr.bf16.mxu0 0
      %385 = vmatpush1.bf16.msra.mxu0 0
      %386 = vmatprep.subr.bf16.mxu0 0
      %387 = vmatpush1.bf16.msra.mxu0 0
      %388 = vmatprep.subr.bf16.mxu0 0
      %389 = vmatpush1.bf16.msra.mxu0 0
      %390 = vmatprep.subr.bf16.mxu0 0
      %391 = vmatpush1.bf16.msra.mxu0 0
      %392 = vmatprep.subr.bf16.mxu0 0
      %393 = vmatpush1.bf16.msra.mxu0 0
      %394 = vmatprep.mubr.bf16.mxu0 0
      %395 = vmatmul.mubr.bf16.gmra.mrb[0].mxu0 %v315
      %v396 = vpop.f32.mrb[0].mxu0
      %v397 = vadd.f32 %v286, %v396
      %v398 = vpop.f32.mrb[0].mxu0
      %v399 = vadd.f32 %v290, %v398
      %v400 = vpop.f32.mrb[0].mxu0
      %v401 = vadd.f32 %v286, %v400
      %v402 = vpop.f32.mrb[0].mxu0
      %v403 = vadd.f32 %v290, %v402
      %404 = vmatprep.mubr.bf16.mxu0 0
      %405 = vmatmul.mubr.bf16.gmra.mrb[0].mxu0 %v318
      %v406 = vpop.f32.mrb[0].mxu0
      %v407 = vadd.f32 %v286, %v406
      %v408 = vpop.f32.mrb[0].mxu0
      %v409 = vadd.f32 %v290, %v408
      %v410 = vpop.f32.mrb[0].mxu0
      %v411 = vadd.f32 %v286, %v410
      %v412 = vpop.f32.mrb[0].mxu0
      %v413 = vadd.f32 %v290, %v412
      %414 = vmatprep.mubr.bf16.mxu0 0
      %415 = vmatmul.mubr.bf16.gmra.mrb[0].mxu0 %v321
      %v416 = vpop.f32.mrb[0].mxu0
      %v417 = vadd.f32 %v286, %v416
      %v418 = vpop.f32.mrb[0].mxu0
      %v419 = vadd.f32 %v290, %v418
      %v420 = vpop.f32.mrb[0].mxu0
      %v421 = vadd.f32 %v286, %v420
      %v422 = vpop.f32.mrb[0].mxu0
      %v423 = vadd.f32 %v290, %v422
      %424 = vmatprep.mubr.bf16.mxu0 0
      %425 = vmatmul.mubr.bf16.gmra.mrb[0].mxu0 %v324
      %v426 = vpop.f32.mrb[0].mxu0
      %v427 = vadd.f32 %v286, %v426
      %v428 = vpop.f32.mrb[0].mxu0
      %v429 = vadd.f32 %v290, %v428
      %v430 = vpop.f32.mrb[0].mxu0
      %v431 = vadd.f32 %v286, %v430
      %v432 = vpop.f32.mrb[0].mxu0
      %v433 = vadd.f32 %v290, %v432
      %434 = vmatprep.mubr.bf16.mxu0 0
      %435 = vmatmul.mubr.bf16.gmra.mrb[0].mxu0 %v327
      %v436 = vpop.f32.mrb[0].mxu0
      %v437 = vadd.f32 %v286, %v436
      %v438 = vpop.f32.mrb[0].mxu0
      %v439 = vadd.f32 %v290, %v438
      %v440 = vpop.f32.mrb[0].mxu0
      %v441 = vadd.f32 %v286, %v440
      %v442 = vpop.f32.mrb[0].mxu0
      %v443 = vadd.f32 %v290, %v442
      %444 = vmatprep.mubr.bf16.mxu0 0
      %445 = vmatmul.mubr.bf16.gmra.mrb[0].mxu0 %v330
      %v446 = vpop.f32.mrb[0].mxu0
      %v447 = vadd.f32 %v286, %v446
      %v448 = vpop.f32.mrb[0].mxu0
      %v449 = vadd.f32 %v290, %v448
      %v450 = vpop.f32.mrb[0].mxu0
      %v451 = vadd.f32 %v286, %v450
      %v452 = vpop.f32.mrb[0].mxu0
      %v453 = vadd.f32 %v290, %v452
      %454 = vmatprep.mubr.bf16.mxu0 0
      %455 = vmatmul.mubr.bf16.gmra.mrb[0].mxu0 %v333
      %v456 = vpop.f32.mrb[0].mxu0
      %v457 = vadd.f32 %v286, %v456
      %v458 = vpop.f32.mrb[0].mxu0
      %v459 = vadd.f32 %v290, %v458
      %v460 = vpop.f32.mrb[0].mxu0
      %v461 = vadd.f32 %v286, %v460
      %v462 = vpop.f32.mrb[0].mxu0
      %v463 = vadd.f32 %v290, %v462
      %464 = vmatprep.mubr.bf16.mxu0 0
      %465 = vmatmul.mubr.bf16.gmra.mrb[0].mxu0 %v336
      %v466 = vpop.f32.mrb[0].mxu0
      %v467 = vadd.f32 %v286, %v466
      %v468 = vpop.f32.mrb[0].mxu0
      %v469 = vadd.f32 %v290, %v468
      %v470 = vpop.f32.mrb[0].mxu0
      %v471 = vadd.f32 %v286, %v470
      %v472 = vpop.f32.mrb[0].mxu0
      %v473 = vadd.f32 %v290, %v472
      %474 = vmatprep.mubr.bf16.mxu0 0
      %475 = vmatmul.mubr.bf16.gmra.mrb[0].mxu0 %v339
      %v476 = vpop.f32.mrb[0].mxu0
      %v477 = vadd.f32 %v286, %v476
      %v478 = vpop.f32.mrb[0].mxu0
      %v479 = vadd.f32 %v290, %v478
      %v480 = vpop.f32.mrb[0].mxu0
      %v481 = vadd.f32 %v286, %v480
      %v482 = vpop.f32.mrb[0].mxu0
      %v483 = vadd.f32 %v290, %v482
      %484 = vmatprep.mubr.bf16.mxu0 0
      %485 = vmatmul.mubr.bf16.gmra.mrb[0].mxu0 %v342
      %v486 = vpop.f32.mrb[0].mxu0
      %v487 = vadd.f32 %v286, %v486
      %v488 = vpop.f32.mrb[0].mxu0
      %v489 = vadd.f32 %v290, %v488
      %v490 = vpop.f32.mrb[0].mxu0
      %v491 = vadd.f32 %v286, %v490
      %v492 = vpop.f32.mrb[0].mxu0
      %v493 = vadd.f32 %v290, %v492
      %494 = vmatprep.mubr.bf16.mxu0 0
      %495 = vmatmul.mubr.bf16.gmra.mrb[0].mxu0 %v345
      %v496 = vpop.f32.mrb[0].mxu0
      %v497 = vadd.f32 %v286, %v496
      %v498 = vpop.f32.mrb[0].mxu0
      %v499 = vadd.f32 %v290, %v498
      %v500 = vpop.f32.mrb[0].mxu0
      %v501 = vadd.f32 %v286, %v500
      %v502 = vpop.f32.mrb[0].mxu0
      %v503 = vadd.f32 %v290, %v502
      %504 = vmatprep.mubr.bf16.mxu0 0
      %505 = vmatmul.mubr.bf16.gmra.mrb[0].mxu0 %v348
      %v506 = vpop.f32.mrb[0].mxu0
      %v507 = vadd.f32 %v286, %v506
      %v508 = vpop.f32.mrb[0].mxu0
      %v509 = vadd.f32 %v290, %v508
      %v510 = vpop.f32.mrb[0].mxu0
      %v511 = vadd.f32 %v286, %v510
      %v512 = vpop.f32.mrb[0].mxu0
      %v513 = vadd.f32 %v290, %v512
      %514 = vmatprep.mubr.bf16.mxu0 0
      %515 = vmatmul.mubr.bf16.gmra.mrb[0].mxu0 %v351
      %v516 = vpop.f32.mrb[0].mxu0
      %v517 = vadd.f32 %v286, %v516
      %v518 = vpop.f32.mrb[0].mxu0
      %v519 = vadd.f32 %v290, %v518
      %v520 = vpop.f32.mrb[0].mxu0
      %v521 = vadd.f32 %v286, %v520
      %v522 = vpop.f32.mrb[0].mxu0
      %v523 = vadd.f32 %v290, %v522
      %524 = vmatprep.mubr.bf16.mxu0 0
      %525 = vmatmul.mubr.bf16.gmra.mrb[0].mxu0 %v354
      %v526 = vpop.f32.mrb[0].mxu0
      %v527 = vadd.f32 %v286, %v526
      %v528 = vpop.f32.mrb[0].mxu0
      %v529 = vadd.f32 %v290, %v528
      %v530 = vpop.f32.mrb[0].mxu0
      %v531 = vadd.f32 %v286, %v530
      %v532 = vpop.f32.mrb[0].mxu0
      %v533 = vadd.f32 %v290, %v532
      %534 = vmatprep.mubr.bf16.mxu0 0
      %535 = vmatmul.mubr.bf16.gmra.mrb[0].mxu0 %v357
      %v536 = vpop.f32.mrb[0].mxu0
      %v537 = vadd.f32 %v286, %v536
      %v538 = vpop.f32.mrb[0].mxu0
      %v539 = vadd.f32 %v290, %v538
      %v540 = vpop.f32.mrb[0].mxu0
      %v541 = vadd.f32 %v286, %v540
      %v542 = vpop.f32.mrb[0].mxu0
      %v543 = vadd.f32 %v290, %v542
      %544 = vmatprep.mubr.bf16.mxu0 0
      %545 = vmatmul.mubr.bf16.gmra.mrb[0].mxu0 %v360
      %v546 = vpop.f32.mrb[0].mxu0
      %v547 = vadd.f32 %v286, %v546
      %v548 = vpop.f32.mrb[0].mxu0
      %v549 = vadd.f32 %v290, %v548
      %v550 = vpop.f32.mrb[0].mxu0
      %v551 = vadd.f32 %v286, %v550
      %v552 = vpop.f32.mrb[0].mxu0
      %v553 = vadd.f32 %v290, %v552
      %554 = vdwg.mxu0
      %v555 = vmul.f32 %v399, %v399
      %v556 = vmul.f32 %v403, %v403
      %v557 = vmul.f32 %v409, %v409
      %v558 = vmul.f32 %v413, %v413
      %v559 = vmul.f32 %v419, %v419
      %v560 = vmul.f32 %v423, %v423
      %v561 = vmul.f32 %v429, %v429
      %v562 = vmul.f32 %v433, %v433
      %v563 = vmul.f32 %v439, %v439
      %v564 = vmul.f32 %v443, %v443
      %v565 = vmul.f32 %v449, %v449
      %v566 = vmul.f32 %v453, %v453
      %v567 = vmul.f32 %v459, %v459
      %v568 = vmul.f32 %v463, %v463
      %v569 = vmul.f32 %v469, %v469
      %v570 = vmul.f32 %v473, %v473
      %v571 = vmul.f32 %v479, %v479
      %v572 = vmul.f32 %v483, %v483
      %v573 = vmul.f32 %v489, %v489
      %v574 = vmul.f32 %v493, %v493
      %v575 = vmul.f32 %v499, %v499
      %v576 = vmul.f32 %v503, %v503
      %v577 = vmul.f32 %v509, %v509
      %v578 = vmul.f32 %v513, %v513
      %v579 = vmul.f32 %v519, %v519
      %v580 = vmul.f32 %v523, %v523
      %v581 = vmul.f32 %v529, %v529
      %v582 = vmul.f32 %v533, %v533
      %v583 = vmul.f32 %v539, %v539
      %v584 = vmul.f32 %v543, %v543
      %v585 = vmul.f32 %v549, %v549
      %v586 = vmul.f32 %v553, %v553
      %v587 = vmul.f32 %v399, %v555
      %v588 = vmul.f32 %v403, %v556
      %v589 = vmul.f32 %v409, %v557
      %v590 = vmul.f32 %v413, %v558
      %v591 = vmul.f32 %v419, %v559
      %v592 = vmul.f32 %v423, %v560
      %v593 = vmul.f32 %v429, %v561
      %v594 = vmul.f32 %v433, %v562
      %v595 = vmul.f32 %v439, %v563
      %v596 = vmul.f32 %v443, %v564
      %v597 = vmul.f32 %v449, %v565
      %v598 = vmul.f32 %v453, %v566
      %v599 = vmul.f32 %v459, %v567
      %v600 = vmul.f32 %v463, %v568
      %v601 = vmul.f32 %v469, %v569
      %v602 = vmul.f32 %v473, %v570
      %v603 = vmul.f32 %v479, %v571
      %v604 = vmul.f32 %v483, %v572
      %v605 = vmul.f32 %v489, %v573
      %v606 = vmul.f32 %v493, %v574
      %v607 = vmul.f32 %v499, %v575
      %v608 = vmul.f32 %v503, %v576
      %v609 = vmul.f32 %v509, %v577
      %v610 = vmul.f32 %v513, %v578
      %v611 = vmul.f32 %v519, %v579
      %v612 = vmul.f32 %v523, %v580
      %v613 = vmul.f32 %v529, %v581
      %v614 = vmul.f32 %v533, %v582
      %v615 = vmul.f32 %v539, %v583
      %v616 = vmul.f32 %v543, %v584
      %v617 = vmul.f32 %v549, %v585
      %v618 = vmul.f32 %v553, %v586
      %v619 = vmul.f32 %v587, 0.044715
      %v620 = vmul.f32 %v588, 0.044715
      %v621 = vmul.f32 %v589, 0.044715
      %v622 = vmul.f32 %v590, 0.044715
      %v623 = vmul.f32 %v591, 0.044715
      %v624 = vmul.f32 %v592, 0.044715
      %v625 = vmul.f32 %v593, 0.044715
      %v626 = vmul.f32 %v594, 0.044715
      %v627 = vmul.f32 %v595, 0.044715
      %v628 = vmul.f32 %v596, 0.044715
      %v629 = vmul.f32 %v597, 0.044715
      %v630 = vmul.f32 %v598, 0.044715
      %v631 = vmul.f32 %v599, 0.044715
      %v632 = vmul.f32 %v600, 0.044715
      %v633 = vmul.f32 %v601, 0.044715
      %v634 = vmul.f32 %v602, 0.044715
      %v635 = vmul.f32 %v603, 0.044715
      %v636 = vmul.f32 %v604, 0.044715
      %v637 = vmul.f32 %v605, 0.044715
      %v638 = vmul.f32 %v606, 0.044715
      %v639 = vmul.f32 %v607, 0.044715
      %v640 = vmul.f32 %v608, 0.044715
      %v641 = vmul.f32 %v609, 0.044715
      %v642 = vmul.f32 %v610, 0.044715
      %v643 = vmul.f32 %v611, 0.044715
      %v644 = vmul.f32 %v612, 0.044715
      %v645 = vmul.f32 %v613, 0.044715
      %v646 = vmul.f32 %v614, 0.044715
      %v647 = vmul.f32 %v615, 0.044715
      %v648 = vmul.f32 %v616, 0.044715
      %v649 = vmul.f32 %v617, 0.044715
      %v650 = vmul.f32 %v618, 0.044715
      %v651 = vadd.f32 %v399, %v619
      %v652 = vadd.f32 %v403, %v620
      %v653 = vadd.f32 %v409, %v621
      %v654 = vadd.f32 %v413, %v622
      %v655 = vadd.f32 %v419, %v623
      %v656 = vadd.f32 %v423, %v624
      %v657 = vadd.f32 %v429, %v625
      %v658 = vadd.f32 %v433, %v626
      %v659 = vadd.f32 %v439, %v627
      %v660 = vadd.f32 %v443, %v628
      %v661 = vadd.f32 %v449, %v629
      %v662 = vadd.f32 %v453, %v630
      %v663 = vadd.f32 %v459, %v631
      %v664 = vadd.f32 %v463, %v632
      %v665 = vadd.f32 %v469, %v633
      %v666 = vadd.f32 %v473, %v634
      %v667 = vadd.f32 %v479, %v635
      %v668 = vadd.f32 %v483, %v636
      %v669 = vadd.f32 %v489, %v637
      %v670 = vadd.f32 %v493, %v638
      %v671 = vadd.f32 %v499, %v639
      %v672 = vadd.f32 %v503, %v640
      %v673 = vadd.f32 %v509, %v641
      %v674 = vadd.f32 %v513, %v642
      %v675 = vadd.f32 %v519, %v643
      %v676 = vadd.f32 %v523, %v644
      %v677 = vadd.f32 %v529, %v645
      %v678 = vadd.f32 %v533, %v646
      %v679 = vadd.f32 %v539, %v647
      %v680 = vadd.f32 %v543, %v648
      %v681 = vadd.f32 %v549, %v649
      %v682 = vadd.f32 %v553, %v650
      %v683 = vmul.f32 %v651, 0.7978846
      %v684 = vmul.f32 %v652, 0.7978846
      %v685 = vmul.f32 %v653, 0.7978846
      %v686 = vmul.f32 %v654, 0.7978846
      %v687 = vmul.f32 %v655, 0.7978846
      %v688 = vmul.f32 %v656, 0.7978846
      %v689 = vmul.f32 %v657, 0.7978846
      %v690 = vmul.f32 %v658, 0.7978846
      %v691 = vmul.f32 %v659, 0.7978846
      %v692 = vmul.f32 %v660, 0.7978846
      %v693 = vmul.f32 %v661, 0.7978846
      %v694 = vmul.f32 %v662, 0.7978846
      %v695 = vmul.f32 %v663, 0.7978846
      %v696 = vmul.f32 %v664, 0.7978846
      %v697 = vmul.f32 %v665, 0.7978846
      %v698 = vmul.f32 %v666, 0.7978846
      %v699 = vmul.f32 %v667, 0.7978846
      %v700 = vmul.f32 %v668, 0.7978846
      %v701 = vmul.f32 %v669, 0.7978846
      %v702 = vmul.f32 %v670, 0.7978846
      %v703 = vmul.f32 %v671, 0.7978846
      %v704 = vmul.f32 %v672, 0.7978846
      %v705 = vmul.f32 %v673, 0.7978846
      %v706 = vmul.f32 %v674, 0.7978846
      %v707 = vmul.f32 %v675, 0.7978846
      %v708 = vmul.f32 %v676, 0.7978846
      %v709 = vmul.f32 %v677, 0.7978846
      %v710 = vmul.f32 %v678, 0.7978846
      %v711 = vmul.f32 %v679, 0.7978846
      %v712 = vmul.f32 %v680, 0.7978846
      %v713 = vmul.f32 %v681, 0.7978846
      %v714 = vmul.f32 %v682, 0.7978846
      %v715 = vtanh.pop %v683
      %v716 = vtanh.pop %v684
      %v717 = vtanh.pop %v685
      %v718 = vtanh.pop %v686
      %v719 = vtanh.pop %v687
      %v720 = vtanh.pop %v688
      %v721 = vtanh.pop %v689
      %v722 = vtanh.pop %v690
      %v723 = vtanh.pop %v691
      %v724 = vtanh.pop %v692
      %v725 = vtanh.pop %v693
      %v726 = vtanh.pop %v694
      %v727 = vtanh.pop %v695
      %v728 = vtanh.pop %v696
      %v729 = vtanh.pop %v697
      %v730 = vtanh.pop %v698
      %v731 = vtanh.pop %v699
      %v732 = vtanh.pop %v700
      %v733 = vtanh.pop %v701
      %v734 = vtanh.pop %v702
      %v735 = vtanh.pop %v703
      %v736 = vtanh.pop %v704
      %v737 = vtanh.pop %v705
      %v738 = vtanh.pop %v706
      %v739 = vtanh.pop %v707
      %v740 = vtanh.pop %v708
      %v741 = vtanh.pop %v709
      %v742 = vtanh.pop %v710
      %v743 = vtanh.pop %v711
      %v744 = vtanh.pop %v712
      %v745 = vtanh.pop %v713
      %v746 = vtanh.pop %v714
      %v747 = vadd.f32 %v715, 1.0
      %v748 = vadd.f32 %v716, 1.0
      %v749 = vadd.f32 %v717, 1.0
      %v750 = vadd.f32 %v718, 1.0
      %v751 = vadd.f32 %v719, 1.0
      %v752 = vadd.f32 %v720, 1.0
      %v753 = vadd.f32 %v721, 1.0
      %v754 = vadd.f32 %v722, 1.0
      %v755 = vadd.f32 %v723, 1.0
      %v756 = vadd.f32 %v724, 1.0
      %v757 = vadd.f32 %v725, 1.0
      %v758 = vadd.f32 %v726, 1.0
      %v759 = vadd.f32 %v727, 1.0
      %v760 = vadd.f32 %v728, 1.0
      %v761 = vadd.f32 %v729, 1.0
      %v762 = vadd.f32 %v730, 1.0
      %v763 = vadd.f32 %v731, 1.0
      %v764 = vadd.f32 %v732, 1.0
      %v765 = vadd.f32 %v733, 1.0
      %v766 = vadd.f32 %v734, 1.0
      %v767 = vadd.f32 %v735, 1.0
      %v768 = vadd.f32 %v736, 1.0
      %v769 = vadd.f32 %v737, 1.0
      %v770 = vadd.f32 %v738, 1.0
      %v771 = vadd.f32 %v739, 1.0
      %v772 = vadd.f32 %v740, 1.0
      %v773 = vadd.f32 %v741, 1.0
      %v774 = vadd.f32 %v742, 1.0
      %v775 = vadd.f32 %v743, 1.0
      %v776 = vadd.f32 %v744, 1.0
      %v777 = vadd.f32 %v745, 1.0
      %v778 = vadd.f32 %v746, 1.0
      %v779 = vmul.f32 %v747, 0.5
      %v780 = vmul.f32 %v748, 0.5
      %v781 = vmul.f32 %v749, 0.5
      %v782 = vmul.f32 %v750, 0.5
      %v783 = vmul.f32 %v751, 0.5
      %v784 = vmul.f32 %v752, 0.5
      %v785 = vmul.f32 %v753, 0.5
      %v786 = vmul.f32 %v754, 0.5
      %v787 = vmul.f32 %v755, 0.5
      %v788 = vmul.f32 %v756, 0.5
      %v789 = vmul.f32 %v757, 0.5
      %v790 = vmul.f32 %v758, 0.5
      %v791 = vmul.f32 %v759, 0.5
      %v792 = vmul.f32 %v760, 0.5
      %v793 = vmul.f32 %v761, 0.5
      %v794 = vmul.f32 %v762, 0.5
      %v795 = vmul.f32 %v763, 0.5
      %v796 = vmul.f32 %v764, 0.5
      %v797 = vmul.f32 %v765, 0.5
      %v798 = vmul.f32 %v766, 0.5
      %v799 = vmul.f32 %v767, 0.5
      %v800 = vmul.f32 %v768, 0.5
      %v801 = vmul.f32 %v769, 0.5
      %v802 = vmul.f32 %v770, 0.5
      %v803 = vmul.f32 %v771, 0.5
      %v804 = vmul.f32 %v772, 0.5
      %v805 = vmul.f32 %v773, 0.5
      %v806 = vmul.f32 %v774, 0.5
      %v807 = vmul.f32 %v775, 0.5
      %v808 = vmul.f32 %v776, 0.5
      %v809 = vmul.f32 %v777, 0.5
      %v810 = vmul.f32 %v778, 0.5
      %v811 = vmul.f32 %v399, %v779
      %v812 = vmul.f32 %v403, %v780
      %v813 = vmul.f32 %v409, %v781
      %v814 = vmul.f32 %v413, %v782
      %v815 = vmul.f32 %v419, %v783
      %v816 = vmul.f32 %v423, %v784
      %v817 = vmul.f32 %v429, %v785
      %v818 = vmul.f32 %v433, %v786
      %v819 = vmul.f32 %v439, %v787
      %v820 = vmul.f32 %v443, %v788
      %v821 = vmul.f32 %v449, %v789
      %v822 = vmul.f32 %v453, %v790
      %v823 = vmul.f32 %v459, %v791
      %v824 = vmul.f32 %v463, %v792
      %v825 = vmul.f32 %v469, %v793
      %v826 = vmul.f32 %v473, %v794
      %v827 = vmul.f32 %v479, %v795
      %v828 = vmul.f32 %v483, %v796
      %v829 = vmul.f32 %v489, %v797
      %v830 = vmul.f32 %v493, %v798
      %v831 = vmul.f32 %v499, %v799
      %v832 = vmul.f32 %v503, %v800
      %v833 = vmul.f32 %v509, %v801
      %v834 = vmul.f32 %v513, %v802
      %v835 = vmul.f32 %v519, %v803
      %v836 = vmul.f32 %v523, %v804
      %v837 = vmul.f32 %v529, %v805
      %v838 = vmul.f32 %v533, %v806
      %v839 = vmul.f32 %v539, %v807
      %v840 = vmul.f32 %v543, %v808
      %v841 = vmul.f32 %v549, %v809
      %v842 = vmul.f32 %v553, %v810
      %v843 = vmul.f32 %v397, %v811
      %v844 = vmul.f32 %v401, %v812
      %v845 = vmul.f32 %v407, %v813
      %v846 = vmul.f32 %v411, %v814
      %v847 = vmul.f32 %v417, %v815
      %v848 = vmul.f32 %v421, %v816
      %v849 = vmul.f32 %v427, %v817
      %v850 = vmul.f32 %v431, %v818
      %v851 = vmul.f32 %v437, %v819
      %v852 = vmul.f32 %v441, %v820
      %v853 = vmul.f32 %v447, %v821
      %v854 = vmul.f32 %v451, %v822
      %v855 = vmul.f32 %v457, %v823
      %v856 = vmul.f32 %v461, %v824
      %v857 = vmul.f32 %v467, %v825
      %v858 = vmul.f32 %v471, %v826
      %v859 = vmul.f32 %v477, %v827
      %v860 = vmul.f32 %v481, %v828
      %v861 = vmul.f32 %v487, %v829
      %v862 = vmul.f32 %v491, %v830
      %v863 = vmul.f32 %v497, %v831
      %v864 = vmul.f32 %v501, %v832
      %v865 = vmul.f32 %v507, %v833
      %v866 = vmul.f32 %v511, %v834
      %v867 = vmul.f32 %v517, %v835
      %v868 = vmul.f32 %v521, %v836
      %v869 = vmul.f32 %v527, %v837
      %v870 = vmul.f32 %v531, %v838
      %v871 = vmul.f32 %v537, %v839
      %v872 = vmul.f32 %v541, %v840
      %v873 = vmul.f32 %v547, %v841
      %v874 = vmul.f32 %v551, %v842
      %v875 = vpack.c.bf16 %v844, %v843
      %v876 = vpack.c.bf16 %v846, %v845
      %v877 = vpack.c.bf16 %v848, %v847
      %v878 = vpack.c.bf16 %v850, %v849
      %v879 = vpack.c.bf16 %v852, %v851
      %v880 = vpack.c.bf16 %v854, %v853
      %v881 = vpack.c.bf16 %v856, %v855
      %v882 = vpack.c.bf16 %v858, %v857
      %v883 = vpack.c.bf16 %v860, %v859
      %v884 = vpack.c.bf16 %v862, %v861
      %v885 = vpack.c.bf16 %v864, %v863
      %v886 = vpack.c.bf16 %v866, %v865
      %v887 = vpack.c.bf16 %v868, %v867
      %v888 = vpack.c.bf16 %v870, %v869
      %v889 = vpack.c.bf16 %v872, %v871
      %v890 = vpack.c.bf16 %v874, %v873
      %v891 = vld [vmem:[%s3] sm:$0xf]
      %v892 = vld [vmem:[%s3 + $0x4] sm:$0xf]
      %v893 = vld [vmem:[%s3 + $0x8] sm:$0xf]
      %v894 = vld [vmem:[%s3 + $0xc] sm:$0xf]
      %v895 = vld [vmem:[%s3 + $0x10] sm:$0xf]
      %v896 = vld [vmem:[%s3 + $0x14] sm:$0xf]
      %v897 = vld [vmem:[%s3 + $0x18] sm:$0xf]
      %v898 = vld [vmem:[%s3 + $0x1c] sm:$0xf]
      %v899 = vld [vmem:[%s3 + $0x20] sm:$0xf]
      %v900 = vld [vmem:[%s3 + $0x24] sm:$0xf]
      %v901 = vld [vmem:[%s3 + $0x28] sm:$0xf]
      %v902 = vld [vmem:[%s3 + $0x2c] sm:$0xf]
      %v903 = vld [vmem:[%s3 + $0x30] sm:$0xf]
      %v904 = vld [vmem:[%s3 + $0x34] sm:$0xf]
      %v905 = vld [vmem:[%s3 + $0x38] sm:$0xf]
      %v906 = vld [vmem:[%s3 + $0x3c] sm:$0xf]
      %v907 = vld [vmem:[%s4] sm:$0x1]
      %v909 = vlaneseq
      %v910 = vshrl.u32 %v909, 7
      %v911 = vsub.s32 0, %v910
      %v912 = vrot.slane %v907, %v911
      %v930 = vunpack.c.l.b16 %v891
      %v931 = vunpack.c.l.b16 %v892
      %v932 = vunpack.c.l.b16 %v893
      %v933 = vunpack.c.l.b16 %v894
      %v934 = vunpack.c.l.b16 %v895
      %v935 = vunpack.c.l.b16 %v896
      %v936 = vunpack.c.l.b16 %v897
      %v937 = vunpack.c.l.b16 %v898
      %v938 = vunpack.c.l.b16 %v899
      %v939 = vunpack.c.l.b16 %v900
      %v940 = vunpack.c.l.b16 %v901
      %v941 = vunpack.c.l.b16 %v902
      %v942 = vunpack.c.l.b16 %v903
      %v943 = vunpack.c.l.b16 %v904
      %v944 = vunpack.c.l.b16 %v905
      %v945 = vunpack.c.l.b16 %v906
      %v946 = vpack.c.b16 %v931, %v930
      %v947 = vpack.c.b16 %v933, %v932
      %v948 = vpack.c.b16 %v935, %v934
      %v949 = vpack.c.b16 %v937, %v936
      %v950 = vpack.c.b16 %v939, %v938
      %v951 = vpack.c.b16 %v941, %v940
      %v952 = vpack.c.b16 %v943, %v942
      %v953 = vpack.c.b16 %v945, %v944
      %962 = vmatprep.subr.bf16.mxu0 0
      %963 = vmatpush1.bf16.msra.mxu0 %v946
      %964 = vmatprep.subr.bf16.mxu0 0
      %965 = vmatpush1.bf16.msra.mxu0 %v947
      %966 = vmatprep.subr.bf16.mxu0 0
      %967 = vmatpush1.bf16.msra.mxu0 %v948
      %968 = vmatprep.subr.bf16.mxu0 0
      %969 = vmatpush1.bf16.msra.mxu0 %v949
      %970 = vmatprep.subr.bf16.mxu0 0
      %971 = vmatpush1.bf16.msra.mxu0 %v950
      %972 = vmatprep.subr.bf16.mxu0 0
      %973 = vmatpush1.bf16.msra.mxu0 %v951
      %974 = vmatprep.subr.bf16.mxu0 0
      %975 = vmatpush1.bf16.msra.mxu0 %v952
      %976 = vmatprep.subr.bf16.mxu0 0
      %977 = vmatpush1.bf16.msra.mxu0 %v953
      %978 = vmatprep.subr.bf16.mxu0 0
      %979 = vmatpush1.bf16.msra.mxu0 0
      %980 = vmatprep.subr.bf16.mxu0 0
      %981 = vmatpush1.bf16.msra.mxu0 0
      %982 = vmatprep.subr.bf16.mxu0 0
      %983 = vmatpush1.bf16.msra.mxu0 0
      %984 = vmatprep.subr.bf16.mxu0 0
      %985 = vmatpush1.bf16.msra.mxu0 0
      %986 = vmatprep.subr.bf16.mxu0 0
      %987 = vmatpush1.bf16.msra.mxu0 0
      %988 = vmatprep.subr.bf16.mxu0 0
      %989 = vmatpush1.bf16.msra.mxu0 0
      %990 = vmatprep.subr.bf16.mxu0 0
      %991 = vmatpush1.bf16.msra.mxu0 0
      %992 = vmatprep.subr.bf16.mxu0 0
      %993 = vmatpush1.bf16.msra.mxu0 0
      %994 = vmatprep.mubr.bf16.mxu0 0
      %995 = vmatmul.mubr.bf16.gmra.mrb[0].mxu0 %v875
      %v996 = vpop.f32.mrb[0].mxu0
      %v997 = vadd.f32 %v912, %v996
      %v998 = vpop.f32.mrb[0].mxu0
      %v999 = vpop.f32.mrb[0].mxu0
      %v1000 = vadd.f32 %v912, %v999
      %v1001 = vpop.f32.mrb[0].mxu0
      %1002 = vmatprep.mubr.bf16.mxu0 0
      %1003 = vmatmul.mubr.bf16.gmra.mrb[0].mxu0 %v876
      %v1004 = vpop.f32.mrb[0].mxu0
      %v1005 = vadd.f32 %v912, %v1004
      %v1006 = vpop.f32.mrb[0].mxu0
      %v1007 = vpop.f32.mrb[0].mxu0
      %v1008 = vadd.f32 %v912, %v1007
      %v1009 = vpop.f32.mrb[0].mxu0
      %1010 = vmatprep.mubr.bf16.mxu0 0
      %1011 = vmatmul.mubr.bf16.gmra.mrb[0].mxu0 %v877
      %v1012 = vpop.f32.mrb[0].mxu0
      %v1013 = vadd.f32 %v912, %v1012
      %v1014 = vpop.f32.mrb[0].mxu0
      %v1015 = vpop.f32.mrb[0].mxu0
      %v1016 = vadd.f32 %v912, %v1015
      %v1017 = vpop.f32.mrb[0].mxu0
      %1018 = vmatprep.mubr.bf16.mxu0 0
      %1019 = vmatmul.mubr.bf16.gmra.mrb[0].mxu0 %v878
      %v1020 = vpop.f32.mrb[0].mxu0
      %v1021 = vadd.f32 %v912, %v1020
      %v1022 = vpop.f32.mrb[0].mxu0
      %v1023 = vpop.f32.mrb[0].mxu0
      %v1024 = vadd.f32 %v912, %v1023
      %v1025 = vpop.f32.mrb[0].mxu0
      %1026 = vmatprep.mubr.bf16.mxu0 0
      %1027 = vmatmul.mubr.bf16.gmra.mrb[0].mxu0 %v879
      %v1028 = vpop.f32.mrb[0].mxu0
      %v1029 = vadd.f32 %v912, %v1028
      %v1030 = vpop.f32.mrb[0].mxu0
      %v1031 = vpop.f32.mrb[0].mxu0
      %v1032 = vadd.f32 %v912, %v1031
      %v1033 = vpop.f32.mrb[0].mxu0
      %1034 = vmatprep.mubr.bf16.mxu0 0
      %1035 = vmatmul.mubr.bf16.gmra.mrb[0].mxu0 %v880
      %v1036 = vpop.f32.mrb[0].mxu0
      %v1037 = vadd.f32 %v912, %v1036
      %v1038 = vpop.f32.mrb[0].mxu0
      %v1039 = vpop.f32.mrb[0].mxu0
      %v1040 = vadd.f32 %v912, %v1039
      %v1041 = vpop.f32.mrb[0].mxu0
      %1042 = vmatprep.mubr.bf16.mxu0 0
      %1043 = vmatmul.mubr.bf16.gmra.mrb[0].mxu0 %v881
      %v1044 = vpop.f32.mrb[0].mxu0
      %v1045 = vadd.f32 %v912, %v1044
      %v1046 = vpop.f32.mrb[0].mxu0
      %v1047 = vpop.f32.mrb[0].mxu0
      %v1048 = vadd.f32 %v912, %v1047
      %v1049 = vpop.f32.mrb[0].mxu0
      %1050 = vmatprep.mubr.bf16.mxu0 0
      %1051 = vmatmul.mubr.bf16.gmra.mrb[0].mxu0 %v882
      %v1052 = vpop.f32.mrb[0].mxu0
      %v1053 = vadd.f32 %v912, %v1052
      %v1054 = vpop.f32.mrb[0].mxu0
      %v1055 = vpop.f32.mrb[0].mxu0
      %v1056 = vadd.f32 %v912, %v1055
      %v1057 = vpop.f32.mrb[0].mxu0
      %1058 = vmatprep.mubr.bf16.mxu0 0
      %1059 = vmatmul.mubr.bf16.gmra.mrb[0].mxu0 %v883
      %v1060 = vpop.f32.mrb[0].mxu0
      %v1061 = vadd.f32 %v912, %v1060
      %v1062 = vpop.f32.mrb[0].mxu0
      %v1063 = vpop.f32.mrb[0].mxu0
      %v1064 = vadd.f32 %v912, %v1063
      %v1065 = vpop.f32.mrb[0].mxu0
      %1066 = vmatprep.mubr.bf16.mxu0 0
      %1067 = vmatmul.mubr.bf16.gmra.mrb[0].mxu0 %v884
      %v1068 = vpop.f32.mrb[0].mxu0
      %v1069 = vadd.f32 %v912, %v1068
      %v1070 = vpop.f32.mrb[0].mxu0
      %v1071 = vpop.f32.mrb[0].mxu0
      %v1072 = vadd.f32 %v912, %v1071
      %v1073 = vpop.f32.mrb[0].mxu0
      %1074 = vmatprep.mubr.bf16.mxu0 0
      %1075 = vmatmul.mubr.bf16.gmra.mrb[0].mxu0 %v885
      %v1076 = vpop.f32.mrb[0].mxu0
      %v1077 = vadd.f32 %v912, %v1076
      %v1078 = vpop.f32.mrb[0].mxu0
      %v1079 = vpop.f32.mrb[0].mxu0
      %v1080 = vadd.f32 %v912, %v1079
      %v1081 = vpop.f32.mrb[0].mxu0
      %1082 = vmatprep.mubr.bf16.mxu0 0
      %1083 = vmatmul.mubr.bf16.gmra.mrb[0].mxu0 %v886
      %v1084 = vpop.f32.mrb[0].mxu0
      %v1085 = vadd.f32 %v912, %v1084
      %v1086 = vpop.f32.mrb[0].mxu0
      %v1087 = vpop.f32.mrb[0].mxu0
      %v1088 = vadd.f32 %v912, %v1087
      %v1089 = vpop.f32.mrb[0].mxu0
      %1090 = vmatprep.mubr.bf16.mxu0 0
      %1091 = vmatmul.mubr.bf16.gmra.mrb[0].mxu0 %v887
      %v1092 = vpop.f32.mrb[0].mxu0
      %v1093 = vadd.f32 %v912, %v1092
      %v1094 = vpop.f32.mrb[0].mxu0
      %v1095 = vpop.f32.mrb[0].mxu0
      %v1096 = vadd.f32 %v912, %v1095
      %v1097 = vpop.f32.mrb[0].mxu0
      %1098 = vmatprep.mubr.bf16.mxu0 0
      %1099 = vmatmul.mubr.bf16.gmra.mrb[0].mxu0 %v888
      %v1100 = vpop.f32.mrb[0].mxu0
      %v1101 = vadd.f32 %v912, %v1100
      %v1102 = vpop.f32.mrb[0].mxu0
      %v1103 = vpop.f32.mrb[0].mxu0
      %v1104 = vadd.f32 %v912, %v1103
      %v1105 = vpop.f32.mrb[0].mxu0
      %1106 = vmatprep.mubr.bf16.mxu0 0
      %1107 = vmatmul.mubr.bf16.gmra.mrb[0].mxu0 %v889
      %v1108 = vpop.f32.mrb[0].mxu0
      %v1109 = vadd.f32 %v912, %v1108
      %v1110 = vpop.f32.mrb[0].mxu0
      %v1111 = vpop.f32.mrb[0].mxu0
      %v1112 = vadd.f32 %v912, %v1111
      %v1113 = vpop.f32.mrb[0].mxu0
      %1114 = vmatprep.mubr.bf16.mxu0 0
      %1115 = vmatmul.mubr.bf16.gmra.mrb[0].mxu0 %v890
      %v1116 = vpop.f32.mrb[0].mxu0
      %v1117 = vadd.f32 %v912, %v1116
      %v1118 = vpop.f32.mrb[0].mxu0
      %v1119 = vpop.f32.mrb[0].mxu0
      %v1120 = vadd.f32 %v912, %v1119
      %v1121 = vpop.f32.mrb[0].mxu0
      %1122 = vdwg.mxu0
      %1123 = vst.msk [vmem:[%s226] sm:$0xff] %vm313, %v997
      %1124 = vst.msk [vmem:[%s226 + $0x8] sm:$0xff] %vm313, %v1000
      %1125 = vst.msk [vmem:[%s226 + $0x10] sm:$0xff] %vm313, %v1005
      %1126 = vst.msk [vmem:[%s226 + $0x18] sm:$0xff] %vm313, %v1008
      %1127 = vst.msk [vmem:[%s226 + $0x20] sm:$0xff] %vm313, %v1013
      %1128 = vst.msk [vmem:[%s226 + $0x28] sm:$0xff] %vm313, %v1016
      %1129 = vst.msk [vmem:[%s226 + $0x30] sm:$0xff] %vm313, %v1021
      %1130 = vst.msk [vmem:[%s226 + $0x38] sm:$0xff] %vm313, %v1024
      %1131 = vst.msk [vmem:[%s226 + $0x40] sm:$0xff] %vm313, %v1029
      %1132 = vst.msk [vmem:[%s226 + $0x48] sm:$0xff] %vm313, %v1032
      %1133 = vst.msk [vmem:[%s226 + $0x50] sm:$0xff] %vm313, %v1037
      %1134 = vst.msk [vmem:[%s226 + $0x58] sm:$0xff] %vm313, %v1040
      %1135 = vst.msk [vmem:[%s226 + $0x60] sm:$0xff] %vm313, %v1045
      %1136 = vst.msk [vmem:[%s226 + $0x68] sm:$0xff] %vm313, %v1048
      %1137 = vst.msk [vmem:[%s226 + $0x70] sm:$0xff] %vm313, %v1053
      %1138 = vst.msk [vmem:[%s226 + $0x78] sm:$0xff] %vm313, %v1056
      %1139 = vst.msk [vmem:[%s226 + $0x80] sm:$0xff] %vm313, %v1061
      %1140 = vst.msk [vmem:[%s226 + $0x88] sm:$0xff] %vm313, %v1064
      %1141 = vst.msk [vmem:[%s226 + $0x90] sm:$0xff] %vm313, %v1069
      %1142 = vst.msk [vmem:[%s226 + $0x98] sm:$0xff] %vm313, %v1072
      %1143 = vst.msk [vmem:[%s226 + $0xa0] sm:$0xff] %vm313, %v1077
      %1144 = vst.msk [vmem:[%s226 + $0xa8] sm:$0xff] %vm313, %v1080
      %1145 = vst.msk [vmem:[%s226 + $0xb0] sm:$0xff] %vm313, %v1085
      %1146 = vst.msk [vmem:[%s226 + $0xb8] sm:$0xff] %vm313, %v1088
      %1147 = vst.msk [vmem:[%s226 + $0xc0] sm:$0xff] %vm313, %v1093
      %1148 = vst.msk [vmem:[%s226 + $0xc8] sm:$0xff] %vm313, %v1096
      %1149 = vst.msk [vmem:[%s226 + $0xd0] sm:$0xff] %vm313, %v1101
      %1150 = vst.msk [vmem:[%s226 + $0xd8] sm:$0xff] %vm313, %v1104
      %1151 = vst.msk [vmem:[%s226 + $0xe0] sm:$0xff] %vm313, %v1109
      %1152 = vst.msk [vmem:[%s226 + $0xe8] sm:$0xff] %vm313, %v1112
      %1153 = vst.msk [vmem:[%s226 + $0xf0] sm:$0xff] %vm313, %v1117
      %1154 = vst.msk [vmem:[%s226 + $0xf8] sm:$0xff] %vm313, %v1120
      %s1155 = smul.u32 32, %s16
      %p1156 = scmp.lt.s32.totalorder %s1155, 63
      %s1157 = scalar_select %p1156, %s1155, 63
      %s1158 = smul.addr %s1157, 8
      %s1159 = scalar_lea.vmem %s5, %s1158
      // Predicated region
      $region41: #{tpu_custom_call.1} parent=39 // pred_check
        %p1160 = pneg %p144
      $region42: #{tpu_custom_call.1} parent=39 // pred_check_branch
        %1162 = sbr.rel (%p1160) target = $region44
      $region43: #{tpu_custom_call.1} parent=39 // pred_region
        %s1163 = smul.u32 32, %s16
      $region44: #{tpu_custom_call.1} parent=39 // pred_fallthru
        _
    $region40: #{tpu_custom_call.1} parent=5 // pred_fallthru
      _
    %p1164 = scmp.le.s32.totalorder 2, %s11
    // Predicated region
    $region45: #{tpu_custom_call.1} parent=5 // pred_check
      %p1165 = pneg %p1164
    $region46: #{tpu_custom_call.1} parent=5 // pred_check_branch
      %1167 = sbr.rel (%p1165) target = $region48
    $region47: #{tpu_custom_call.1} parent=5 // pred_region
      %s1168 = ssub.s32 %s11, 2
      // Predicated region
      $region49: #{tpu_custom_call.1} parent=47 // pred_check
        %p1169 = pneg %p150
      $region50: #{tpu_custom_call.1} parent=47 // pred_check_branch
        %1171 = sbr.rel (%p1169) target = $region52
      $region51: #{tpu_custom_call.1} parent=47 // pred_region
        %s1172 = smul.u32 32, %s17
        %p1173 = scmp.lt.s32.totalorder %s1172, 63
        %s1174 = scalar_select %p1173, %s1172, 63
        %s1175 = smul.addr %s1174, 8
        %s1176 = scalar_lea.vmem %s5, %s1175
      $region52: #{tpu_custom_call.1} parent=47 // pred_fallthru
        _
    $region48: #{tpu_custom_call.1} parent=5 // pred_fallthru
      _
  $region6: #{tpu_custom_call.1} parent=0 // loop_footer
    %s15 = sadd.s32 1, %s11
  $region7: #{tpu_custom_call.1} parent=0 // loop_footer_branch
    %10 = sbr.rel target = $region3
  $region8: #{tpu_custom_call.1} parent=0 // loop_exit
    _

</llo_original>
